<compile_context>
chip_gen: v6e
topology: v6e:2x2x1
jax: 0.10.0
libtpu: 0.0.40
codegen_flags: <defaults>
</compile_context>

<pallas_src>
import jax
import jax.numpy as jnp
from jax import lax
from jax.experimental import pallas as pl
from jax.experimental.pallas import tpu as pltpu

_LANES = 128
_MANT_BITS = 23
_MANT_MASK = (1 << _MANT_BITS) - 1
_INV_2P23 = 1.0 / float(1 << _MANT_BITS)
_TWO_PI = 6.283185307179586


def _srl(x, k):
    """Logical right shift on int32 (arithmetic shift + mask of sign bits)."""
    return (x >> k) & ((1 << (32 - k)) - 1)


def _fmix32(x):
    """Murmur3 finalizer on int32 -- software-PRNG fallback for non-TPU backends."""
    x = x ^ _srl(x, 16)
    x = x * (-2048144789)      # 0x85EBCA6B
    x = x ^ _srl(x, 13)
    x = x * (-1028477387)      # 0xC2B2AE35
    x = x ^ _srl(x, 16)
    return x


def _bits_to_uniform(bits):
    """int32 random bits -> f32 uniform strictly inside (0, 1) from the top 23 bits."""
    m = ((bits >> 9) & _MANT_MASK).astype(jnp.float32)   # in [0, 2^23)
    return (m + 0.5) * _INV_2P23                          # never 0.0 or 1.0


def _cos_2pi(u):
    """cos(2*pi*u) for u in (0, 1) using only VPU ops (range fold + deg-8 Taylor)."""
    a = jnp.abs(u - 0.5)                # [0, 0.5];  cos(2*pi*u) = -cos(2*pi*a)
    b = jnp.minimum(a, 0.5 - a)         # [0, 0.25]; cos(2*pi*a) = +/- cos(2*pi*b)
    y = _TWO_PI * b                     # [0, pi/2]
    y2 = y * y
    p = 1.0 + y2 * (-0.5 + y2 * (1.0 / 24.0
                                 + y2 * (-1.0 / 720.0 + y2 * (1.0 / 40320.0))))
    # Combine both fold signs: cos(2*pi*u) = -p when a <= 0.25, else +p.
    return jnp.where(a <= 0.25, -p, p)


def _make_sampling_kernel(use_hw_prng):
    def kernel(seed_ref, x_ref, o_ref):
        shape = x_ref.shape

        if use_hw_prng:
            # Hardware PRNG: per-tile (seed, tile_id) seeding keeps the grid
            # axis safe to shard across TensorCores ("parallel").
            pltpu.prng_seed(seed_ref[0], pl.program_id(0))
            b1 = pltpu.prng_random_bits(shape)
            b2 = pltpu.prng_random_bits(shape)
            if b1.dtype != jnp.int32:
                b1 = pltpu.bitcast(b1, jnp.int32)
                b2 = pltpu.bitcast(b2, jnp.int32)
        else:
            # Stateless counter-based fallback (non-TPU backends / interpret).
            br, bc = shape
            row = lax.broadcasted_iota(jnp.int32, shape, 0) + pl.program_id(0) * br
            col = lax.broadcasted_iota(jnp.int32, shape, 1)
            g = row * bc + col
            h = g * (-1640531527) + seed_ref[0]          # golden-ratio stride
            b1 = _fmix32(h)
            b2 = _fmix32(h + 1013904223)

        # Box-Muller: z = sqrt(-2 ln u1) * cos(2 pi u2); marginal is exactly N(0,1).
        u1 = _bits_to_uniform(b1)
        u2 = _bits_to_uniform(b2)
        r = jnp.sqrt(-2.0 * jnp.log(u1))
        z = r * _cos_2pi(u2)

        # Cast noise to the I/O dtype so the final add runs natively (bf16 on v6e/v7x).
        o_ref[...] = x_ref[...] + z.astype(o_ref.dtype)

    return kernel


def _pick_lane_width(n):
    """Widest lane count (multiple of 128) dividing n, preferring >= 8 rows."""
    best = None
    for c in (4096, 2048, 1024, 512, 256, _LANES):
        if n % c == 0:
            if best is None:
                best = c
            if n // c >= 8:
                return c
    return best


@jax.jit
def sampling_forward(x, seed):
    """JAX/Pallas equivalent of Sampling.forward(x) = x + N(0, 1) noise."""
    orig_shape = x.shape
    n = x.size
    itemsize = jnp.dtype(x.dtype).itemsize

    flat = x.reshape(-1)                       # contiguous reshape: no copy
    cols = _pick_lane_width(n)
    padded = False
    if cols is None:
        # TODO(synk): ragged element counts (not divisible by 128) fall back to
        # one pad copy; the node x feature slabs this module sees never hit it.
        cols = _LANES
        flat = jnp.pad(flat, (0, (-n) % (8 * cols)))
        padded = True
    rows = flat.size // cols
    x2d = flat.reshape(rows, cols)

    # ~2 MiB input tiles.  The Box-Muller noise path is ~30 VPU ops + 2 EUP
    # pushes per element (near the HBM roofline), so tiles only need to be big
    # enough to amortize the ~0.35 us per-grid-step overhead.  Double-buffered
    # in+out (~8 MiB) plus block-sized f32 temporaries stay well under the
    # 32 MiB vmem limit requested below (v5e/v6e: 128 MiB physical VMEM,
    # v7x: 64 MiB physical).
    target_rows = max(8, ((2 * 1024 * 1024) // (cols * itemsize)) // 8 * 8)
    block_rows = min(rows, target_rows)
    if rows >= 16:
        # Keep at least 2 grid steps so v7x's two TensorCores both get work.
        block_rows = min(block_rows, max(8, ((rows + 15) // 16) * 8))
    grid = (pl.cdiv(rows, block_rows),)

    seed_arr = jnp.asarray(seed, dtype=jnp.int32).reshape((1,))
    use_hw_prng = jax.default_backend() == "tpu"

    cost = pl.CostEstimate(
        flops=35 * rows * cols,                # uniforms + Box-Muller + poly cosine
        transcendentals=2 * rows * cols,       # log + sqrt per element
        bytes_accessed=2 * rows * cols * itemsize,
    )

    out2d = pl.pallas_call(
        _make_sampling_kernel(use_hw_prng),
        out_shape=jax.ShapeDtypeStruct((rows, cols), x.dtype),
        grid=grid,
        in_specs=[
            pl.BlockSpec(memory_space=pltpu.SMEM),                # seed scalar
            pl.BlockSpec((block_rows, cols), lambda i: (i, 0)),   # input tile
        ],
        out_specs=pl.BlockSpec((block_rows, cols), lambda i: (i, 0)),
        compiler_params=pltpu.CompilerParams(
            # Per-tile hardware-PRNG seeding (or the stateless fallback hash)
            # makes tiles independent, so the axis can be sharded across
            # v7x's two TensorCores.
            dimension_semantics=("parallel",),
            vmem_limit_bytes=32 * 1024 * 1024,
        ),
        cost_estimate=cost,
    )(seed_arr, x2d)

    out = out2d.reshape(-1)
    if padded:
        out = out[:n]
    return out.reshape(orig_shape)


if __name__ == "__main__":
    key = jax.random.PRNGKey(0)
    # Small input consistent with a generic elementwise noise module.
    x = jax.random.normal(key, (2, 4, 16, 16), dtype=jnp.float32)

    out = sampling_forward(x, 0)
    out = jax.block_until_ready(out)

    # Sanity: shape/dtype preserved, residual (out - x) looks like N(0, 1).
    assert out.shape == x.shape and out.dtype == x.dtype
    resid = out - x
    mean = float(jnp.mean(resid))
    std = float(jnp.std(resid))
    assert abs(mean) < 0.2, f"noise mean too far from 0: {mean}"
    assert 0.7 < std < 1.3, f"noise std too far from 1: {std}"
    assert bool(jnp.all(jnp.isfinite(out))), "non-finite values in output"

    print("KERNEL_OK")
</pallas_src>

<mosaic_0001>
module attributes {stable_mosaic.version = 11 : i64} {
  func.func @kernel(%arg0: i32, %arg1: memref<1xi32, #tpu.memory_space<smem>>, %arg2: memref<8x256xf32, #tpu.memory_space<vmem>>, %arg3: memref<8x256xf32, #tpu.memory_space<vmem>>) attributes {dimension_semantics = [#tpu.dimension_semantics<parallel>], iteration_bounds = array<i64: 1>, scalar_prefetch = 0 : i64, scratch_operands = 0 : i64, tpu.core_type = #tpu.core_type<tc>, window_params = [{transform_indices = @transform_0, window_bounds = array<i64: 1>}, {transform_indices = @transform_1, window_bounds = array<i64: 8, 256>}, {transform_indices = @transform_2, window_bounds = array<i64: 8, 256>}]} {
    %0 = tpu.iota {dimensions = array<i32: 0>} : vector<8x256xi32>
    %c8_i32 = arith.constant 8 : i32
    %1 = arith.muli %arg0, %c8_i32 : i32
    %2 = vector.broadcast %1 : i32 to vector<8x256xi32>
    %3 = arith.addi %0, %2 : vector<8x256xi32>
    %4 = tpu.iota {dimensions = array<i32: 1>} : vector<8x256xi32>
    %c256_i32 = arith.constant 256 : i32
    %5 = vector.broadcast %c256_i32 : i32 to vector<8x256xi32>
    %6 = arith.muli %3, %5 : vector<8x256xi32>
    %7 = arith.addi %6, %4 : vector<8x256xi32>
    %c-1640531527_i32 = arith.constant -1640531527 : i32
    %8 = vector.broadcast %c-1640531527_i32 : i32 to vector<8x256xi32>
    %9 = arith.muli %7, %8 : vector<8x256xi32>
    %c0 = arith.constant 0 : index
    %10 = memref.load %arg1[%c0] : memref<1xi32, #tpu.memory_space<smem>>
    %11 = vector.broadcast %10 : i32 to vector<8x256xi32>
    %12 = arith.addi %9, %11 : vector<8x256xi32>
    %c16_i32 = arith.constant 16 : i32
    %13 = vector.broadcast %c16_i32 : i32 to vector<8x256xi32>
    %14 = arith.shrsi %12, %13 : vector<8x256xi32>
    %c65535_i32 = arith.constant 65535 : i32
    %15 = vector.broadcast %c65535_i32 : i32 to vector<8x256xi32>
    %16 = arith.andi %14, %15 : vector<8x256xi32>
    %17 = arith.xori %12, %16 : vector<8x256xi32>
    %c-2048144789_i32 = arith.constant -2048144789 : i32
    %18 = vector.broadcast %c-2048144789_i32 : i32 to vector<8x256xi32>
    %19 = arith.muli %17, %18 : vector<8x256xi32>
    %c13_i32 = arith.constant 13 : i32
    %20 = vector.broadcast %c13_i32 : i32 to vector<8x256xi32>
    %21 = arith.shrsi %19, %20 : vector<8x256xi32>
    %c524287_i32 = arith.constant 524287 : i32
    %22 = vector.broadcast %c524287_i32 : i32 to vector<8x256xi32>
    %23 = arith.andi %21, %22 : vector<8x256xi32>
    %24 = arith.xori %19, %23 : vector<8x256xi32>
    %c-1028477387_i32 = arith.constant -1028477387 : i32
    %25 = vector.broadcast %c-1028477387_i32 : i32 to vector<8x256xi32>
    %26 = arith.muli %24, %25 : vector<8x256xi32>
    %c16_i32_0 = arith.constant 16 : i32
    %27 = vector.broadcast %c16_i32_0 : i32 to vector<8x256xi32>
    %28 = arith.shrsi %26, %27 : vector<8x256xi32>
    %c65535_i32_1 = arith.constant 65535 : i32
    %29 = vector.broadcast %c65535_i32_1 : i32 to vector<8x256xi32>
    %30 = arith.andi %28, %29 : vector<8x256xi32>
    %31 = arith.xori %26, %30 : vector<8x256xi32>
    %c1013904223_i32 = arith.constant 1013904223 : i32
    %32 = vector.broadcast %c1013904223_i32 : i32 to vector<8x256xi32>
    %33 = arith.addi %12, %32 : vector<8x256xi32>
    %c16_i32_2 = arith.constant 16 : i32
    %34 = vector.broadcast %c16_i32_2 : i32 to vector<8x256xi32>
    %35 = arith.shrsi %33, %34 : vector<8x256xi32>
    %c65535_i32_3 = arith.constant 65535 : i32
    %36 = vector.broadcast %c65535_i32_3 : i32 to vector<8x256xi32>
    %37 = arith.andi %35, %36 : vector<8x256xi32>
    %38 = arith.xori %33, %37 : vector<8x256xi32>
    %c-2048144789_i32_4 = arith.constant -2048144789 : i32
    %39 = vector.broadcast %c-2048144789_i32_4 : i32 to vector<8x256xi32>
    %40 = arith.muli %38, %39 : vector<8x256xi32>
    %c13_i32_5 = arith.constant 13 : i32
    %41 = vector.broadcast %c13_i32_5 : i32 to vector<8x256xi32>
    %42 = arith.shrsi %40, %41 : vector<8x256xi32>
    %c524287_i32_6 = arith.constant 524287 : i32
    %43 = vector.broadcast %c524287_i32_6 : i32 to vector<8x256xi32>
    %44 = arith.andi %42, %43 : vector<8x256xi32>
    %45 = arith.xori %40, %44 : vector<8x256xi32>
    %c-1028477387_i32_7 = arith.constant -1028477387 : i32
    %46 = vector.broadcast %c-1028477387_i32_7 : i32 to vector<8x256xi32>
    %47 = arith.muli %45, %46 : vector<8x256xi32>
    %c16_i32_8 = arith.constant 16 : i32
    %48 = vector.broadcast %c16_i32_8 : i32 to vector<8x256xi32>
    %49 = arith.shrsi %47, %48 : vector<8x256xi32>
    %c65535_i32_9 = arith.constant 65535 : i32
    %50 = vector.broadcast %c65535_i32_9 : i32 to vector<8x256xi32>
    %51 = arith.andi %49, %50 : vector<8x256xi32>
    %52 = arith.xori %47, %51 : vector<8x256xi32>
    %c9_i32 = arith.constant 9 : i32
    %53 = vector.broadcast %c9_i32 : i32 to vector<8x256xi32>
    %54 = arith.shrsi %31, %53 : vector<8x256xi32>
    %c8388607_i32 = arith.constant 8388607 : i32
    %55 = vector.broadcast %c8388607_i32 : i32 to vector<8x256xi32>
    %56 = arith.andi %54, %55 : vector<8x256xi32>
    %57 = arith.sitofp %56 : vector<8x256xi32> to vector<8x256xf32>
    %cst = arith.constant 5.000000e-01 : f32
    %58 = vector.broadcast %cst : f32 to vector<8x256xf32>
    %59 = arith.addf %57, %58 : vector<8x256xf32>
    %cst_10 = arith.constant 1.1920929E-7 : f32
    %60 = vector.broadcast %cst_10 : f32 to vector<8x256xf32>
    %61 = arith.mulf %59, %60 : vector<8x256xf32>
    %c9_i32_11 = arith.constant 9 : i32
    %62 = vector.broadcast %c9_i32_11 : i32 to vector<8x256xi32>
    %63 = arith.shrsi %52, %62 : vector<8x256xi32>
    %c8388607_i32_12 = arith.constant 8388607 : i32
    %64 = vector.broadcast %c8388607_i32_12 : i32 to vector<8x256xi32>
    %65 = arith.andi %63, %64 : vector<8x256xi32>
    %66 = arith.sitofp %65 : vector<8x256xi32> to vector<8x256xf32>
    %cst_13 = arith.constant 5.000000e-01 : f32
    %67 = vector.broadcast %cst_13 : f32 to vector<8x256xf32>
    %68 = arith.addf %66, %67 : vector<8x256xf32>
    %cst_14 = arith.constant 1.1920929E-7 : f32
    %69 = vector.broadcast %cst_14 : f32 to vector<8x256xf32>
    %70 = arith.mulf %68, %69 : vector<8x256xf32>
    %71 = math.log %61 : vector<8x256xf32>
    %cst_15 = arith.constant -2.000000e+00 : f32
    %72 = vector.broadcast %cst_15 : f32 to vector<8x256xf32>
    %73 = arith.mulf %72, %71 : vector<8x256xf32>
    %74 = math.sqrt %73 : vector<8x256xf32>
    %cst_16 = arith.constant 5.000000e-01 : f32
    %75 = vector.broadcast %cst_16 : f32 to vector<8x256xf32>
    %76 = arith.subf %70, %75 : vector<8x256xf32>
    %77 = math.absf %76 : vector<8x256xf32>
    %cst_17 = arith.constant 5.000000e-01 : f32
    %78 = vector.broadcast %cst_17 : f32 to vector<8x256xf32>
    %79 = arith.subf %78, %77 : vector<8x256xf32>
    %80 = arith.minimumf %77, %79 : vector<8x256xf32>
    %cst_18 = arith.constant 6.28318548 : f32
    %81 = vector.broadcast %cst_18 : f32 to vector<8x256xf32>
    %82 = arith.mulf %81, %80 : vector<8x256xf32>
    %83 = arith.mulf %82, %82 : vector<8x256xf32>
    %cst_19 = arith.constant 2.48015876E-5 : f32
    %84 = vector.broadcast %cst_19 : f32 to vector<8x256xf32>
    %85 = arith.mulf %83, %84 : vector<8x256xf32>
    %cst_20 = arith.constant -0.00138888892 : f32
    %86 = vector.broadcast %cst_20 : f32 to vector<8x256xf32>
    %87 = arith.addf %86, %85 : vector<8x256xf32>
    %88 = arith.mulf %83, %87 : vector<8x256xf32>
    %cst_21 = arith.constant 0.0416666679 : f32
    %89 = vector.broadcast %cst_21 : f32 to vector<8x256xf32>
    %90 = arith.addf %89, %88 : vector<8x256xf32>
    %91 = arith.mulf %83, %90 : vector<8x256xf32>
    %cst_22 = arith.constant -5.000000e-01 : f32
    %92 = vector.broadcast %cst_22 : f32 to vector<8x256xf32>
    %93 = arith.addf %92, %91 : vector<8x256xf32>
    %94 = arith.mulf %83, %93 : vector<8x256xf32>
    %cst_23 = arith.constant 1.000000e+00 : f32
    %95 = vector.broadcast %cst_23 : f32 to vector<8x256xf32>
    %96 = arith.addf %95, %94 : vector<8x256xf32>
    %cst_24 = arith.constant 2.500000e-01 : f32
    %97 = vector.broadcast %cst_24 : f32 to vector<8x256xf32>
    %98 = arith.cmpf ole, %77, %97 : vector<8x256xf32>
    %cst_25 = arith.constant 0.000000e+00 : f32
    %99 = vector.broadcast %cst_25 : f32 to vector<8x256xf32>
    %100 = arith.subf %99, %96 : vector<8x256xf32>
    %101 = arith.select %98, %100, %96 : vector<8x256xi1>, vector<8x256xf32>
    %102 = arith.mulf %74, %101 : vector<8x256xf32>
    %c0_26 = arith.constant 0 : index
    %c0_27 = arith.constant 0 : index
    %103 = vector.load %arg2[%c0_26, %c0_27] : memref<8x256xf32, #tpu.memory_space<vmem>>, vector<8x256xf32>
    %104 = arith.addf %103, %102 : vector<8x256xf32>
    %c0_28 = arith.constant 0 : index
    %c0_29 = arith.constant 0 : index
    %105 = vector.load %arg3[%c0_28, %c0_29] : memref<8x256xf32, #tpu.memory_space<vmem>>, vector<8x256xf32>
    tpu.vector_store %arg3[%c0_28, %c0_29], %104 {strides = array<i32>} : memref<8x256xf32, #tpu.memory_space<vmem>>, vector<8x256xf32>,
    return
  }
  func.func @transform_0(%arg0: i32) -> i32 {
    %c0_i32 = arith.constant 0 : i32
    %c0_i32_0 = arith.constant 0 : i32
    return %c0_i32 : i32
  }
  func.func @transform_1(%arg0: i32) -> (i32, i32) {
    %c0_i32 = arith.constant 0 : i32
    %c0_i32_0 = arith.constant 0 : i32
    return %arg0, %c0_i32 : i32, i32
  }
  func.func @transform_2(%arg0: i32) -> (i32, i32) {
    %c0_i32 = arith.constant 0 : i32
    %c0_i32_0 = arith.constant 0 : i32
    return %arg0, %c0_i32 : i32, i32
  }
}

</mosaic_0001>

<llo_original>
// kernel: sampling_forward.1
$region0: #{sampling_forward.1}
  #allocation0 [shape = 'u32[]', space=smem, size = 0x4, offset = 0x4, fixed_abs, tag = 'smem constant byte address 0x4 - core index']
  #allocation1 [shape = 'u32[144,128]{1,0:T(1,128)}', space=vmem, size = 0x12000, scoped, tag = 'internal scratch']
  #allocation2 [shape = 's32[1]{0:T(128)S(6)}', space=smem, size = 0x200, scoped, tag = 'scoped memory for sampling_forward.1']
  %s0 = inlined_call_operand.<no memory space> [shape: s32[1], index: 0, kind: input, shape index: {}]
  %s1 = inlined_call_operand.vmem [shape: f32[8,256], index: 1, kind: input, shape index: {}]
  %s2 = inlined_call_operand.vmem [shape: f32[8,256], index: 2, kind: output, shape index: {}]
  %s3 = sld [smem:[#allocation0]]
  $region18: #{sampling_forward.1} parent=0
    _
  %s5 = ssub.s32 1, %s3
  %s6 = scalar_select 0, %s5, %s3
  %7 = sst [smem:[#allocation2]] %s0
  // Predicated region
  $region2: #{sampling_forward.1} parent=0 // pred_check
    _
  $region3: #{sampling_forward.1} parent=0 // pred_check_branch
    %9 = sbr.rel (0) target = $region5
  $region4: #{sampling_forward.1} parent=0 // pred_region
    _
  $region5: #{sampling_forward.1} parent=0 // pred_fallthru
    _
  // Predicated region
  $region6: #{sampling_forward.1} parent=0 // pred_check
    _
  $region7: #{sampling_forward.1} parent=0 // pred_check_branch
    %11 = sbr.rel (0) target = $region9
  $region8: #{sampling_forward.1} parent=0 // pred_region
    _
  $region9: #{sampling_forward.1} parent=0 // pred_fallthru
    _
  %v12 = vlaneseq
  %v13 = vshrl.u32 %v12, 7
  %s14 = smul.u32 0, 8
  %v15 = vstv %s14
  %v16 = vadd.s32 %v13, %v15
  %v17 = vlaneseq
  %v18 = vand.u32 %v17, 127
  %v19 = vadd.s32 %v18, 128
  %v20 = vmul.u32 %v16, 256
  %v21 = vadd.s32 %v20, %v18
  %v22 = vadd.s32 %v20, %v19
  %v23 = vmul.u32 %v21, 2654435769
  %v24 = vmul.u32 %v22, 2654435769
  %s25 = sld [smem:[#allocation2]]
  %v26 = vstv %s25
  %v27 = vadd.s32 %v23, %v26
  %v28 = vadd.s32 %v24, %v26
  %v29 = vshra.s32 %v27, 16
  %v30 = vshra.s32 %v28, 16
  %v31 = vand.u32 %v29, 65535
  %v32 = vand.u32 %v30, 65535
  %v33 = vxor.u32 %v27, %v31
  %v34 = vxor.u32 %v28, %v32
  %v35 = vmul.u32 %v33, 2246822507
  %v36 = vmul.u32 %v34, 2246822507
  %v37 = vshra.s32 %v35, 13
  %v38 = vshra.s32 %v36, 13
  %v39 = vand.u32 %v37, 524287
  %v40 = vand.u32 %v38, 524287
  %v41 = vxor.u32 %v35, %v39
  %v42 = vxor.u32 %v36, %v40
  %v43 = vmul.u32 %v41, 3266489909
  %v44 = vmul.u32 %v42, 3266489909
  %v45 = vshra.s32 %v43, 16
  %v46 = vshra.s32 %v44, 16
  %v47 = vand.u32 %v45, 65535
  %v48 = vand.u32 %v46, 65535
  %v49 = vxor.u32 %v43, %v47
  %v50 = vxor.u32 %v44, %v48
  %v51 = vadd.s32 %v27, 1013904223
  %v52 = vadd.s32 %v28, 1013904223
  %v53 = vshra.s32 %v51, 16
  %v54 = vshra.s32 %v52, 16
  %v55 = vand.u32 %v53, 65535
  %v56 = vand.u32 %v54, 65535
  %v57 = vxor.u32 %v51, %v55
  %v58 = vxor.u32 %v52, %v56
  %v59 = vmul.u32 %v57, 2246822507
  %v60 = vmul.u32 %v58, 2246822507
  %v61 = vshra.s32 %v59, 13
  %v62 = vshra.s32 %v60, 13
  %v63 = vand.u32 %v61, 524287
  %v64 = vand.u32 %v62, 524287
  %v65 = vxor.u32 %v59, %v63
  %v66 = vxor.u32 %v60, %v64
  %v67 = vmul.u32 %v65, 3266489909
  %v68 = vmul.u32 %v66, 3266489909
  %v69 = vshra.s32 %v67, 16
  %v70 = vshra.s32 %v68, 16
  %v71 = vand.u32 %v69, 65535
  %v72 = vand.u32 %v70, 65535
  %v73 = vxor.u32 %v67, %v71
  %v74 = vxor.u32 %v68, %v72
  %v75 = vshra.s32 %v49, 9
  %v76 = vshra.s32 %v50, 9
  %v77 = vand.u32 %v75, 8388607
  %v78 = vand.u32 %v76, 8388607
  %v79 = vcvt.s32.f32 %v77
  %v80 = vcvt.s32.f32 %v78
  %v81 = vadd.f32 %v79, 0.5
  %v82 = vadd.f32 %v80, 0.5
  %v83 = vmul.f32 %v81, 1.1920929e-07
  %v84 = vmul.f32 %v82, 1.1920929e-07
  %v85 = vshra.s32 %v73, 9
  %v86 = vshra.s32 %v74, 9
  %v87 = vand.u32 %v85, 8388607
  %v88 = vand.u32 %v86, 8388607
  %v89 = vcvt.s32.f32 %v87
  %v90 = vcvt.s32.f32 %v88
  %v91 = vadd.f32 %v89, 0.5
  %v92 = vadd.f32 %v90, 0.5
  %v93 = vmul.f32 %v91, 1.1920929e-07
  %v94 = vmul.f32 %v92, 1.1920929e-07
  %v95 = vlog2.pop %v83
  %v96 = vmul.f32 %v95, 0.6931472
  %v97 = vlog2.pop %v84
  %v98 = vmul.f32 %v97, 0.6931472
  %v99 = vmul.f32 %v96, -2.0
  %v100 = vmul.f32 %v98, -2.0
  %v101 = vrsqrt.pop %v99
  %v102 = vmul.f32 %v99, %v101
  %vm103 = vcmp.eq.f32.partialorder %v99, inf
  %v104 = vsel %vm103, %v99, %v102
  %vm105 = vcmp.eq.f32.partialorder %v99, 0.0
  %v106 = vand.u32 %v99, 2147483648
  %v107 = vsel %vm105, %v106, %v104
  %v108 = vrsqrt.pop %v100
  %v109 = vmul.f32 %v100, %v108
  %vm110 = vcmp.eq.f32.partialorder %v100, inf
  %v111 = vsel %vm110, %v100, %v109
  %vm112 = vcmp.eq.f32.partialorder %v100, 0.0
  %v113 = vand.u32 %v100, 2147483648
  %v114 = vsel %vm112, %v113, %v111
  %v115 = vsub.f32 %v93, 0.5
  %v116 = vsub.f32 %v94, 0.5
  %v117 = vand.u32 2147483647, %v115
  %v118 = vand.u32 2147483647, %v116
  %v119 = vsub.f32 0.5, %v117
  %v120 = vsub.f32 0.5, %v118
  %v121 = vmin.f32 %v117, %v119
  %v122 = vmin.f32 %v118, %v120
  %v123 = vmul.f32 %v121, 6.2831855
  %v124 = vmul.f32 %v122, 6.2831855
  %v125 = vmul.f32 %v123, %v123
  %v126 = vmul.f32 %v124, %v124
  %v127 = vmul.f32 %v125, 2.4801588e-05
  %v128 = vmul.f32 %v126, 2.4801588e-05
  %v129 = vadd.f32 %v127, -0.0013888889
  %v130 = vadd.f32 %v128, -0.0013888889
  %v131 = vmul.f32 %v125, %v129
  %v132 = vmul.f32 %v126, %v130
  %v133 = vadd.f32 %v131, 0.041666668
  %v134 = vadd.f32 %v132, 0.041666668
  %v135 = vmul.f32 %v125, %v133
  %v136 = vmul.f32 %v126, %v134
  %v137 = vadd.f32 %v135, -0.5
  %v138 = vadd.f32 %v136, -0.5
  %v139 = vmul.f32 %v125, %v137
  %v140 = vmul.f32 %v126, %v138
  %v141 = vadd.f32 %v139, 1.0
  %v142 = vadd.f32 %v140, 1.0
  %vm143 = vcmp.le.f32.partialorder %v117, 0.25
  %vm144 = vcmp.le.f32.partialorder %v118, 0.25
  %v145 = vsub.f32 0.0, %v141
  %v146 = vsub.f32 0.0, %v142
  %v147 = vsel %vm143, %v145, %v141
  %v148 = vsel %vm144, %v146, %v142
  %v149 = vmul.f32 %v107, %v147
  %v150 = vmul.f32 %v114, %v148
  %v151 = vld [vmem:[%s1] sm:$0xff]
  %v152 = vld [vmem:[%s1 + $0x8] sm:$0xff]
  %v153 = vadd.f32 %v151, %v149
  %v154 = vadd.f32 %v152, %v150
  %155 = vst [vmem:[%s2] sm:$0xff] %v153
  %156 = vst [vmem:[%s2 + $0x8] sm:$0xff] %v154
  // Predicated region
  $region10: #{sampling_forward.1} parent=0 // pred_check
    _
  $region11: #{sampling_forward.1} parent=0 // pred_check_branch
    %158 = sbr.rel (0) target = $region13
  $region12: #{sampling_forward.1} parent=0 // pred_region
    _
  $region13: #{sampling_forward.1} parent=0 // pred_fallthru
    _
  // Predicated region
  $region14: #{sampling_forward.1} parent=0 // pred_check
    _
  $region15: #{sampling_forward.1} parent=0 // pred_check_branch
    %160 = sbr.rel (0) target = $region17
  $region16: #{sampling_forward.1} parent=0 // pred_region
    _
  $region17: #{sampling_forward.1} parent=0 // pred_fallthru
    _

</llo_original>
